<compile_context>
chip_gen: v5e
topology: v5e:2x2
jax: 0.10.0
libtpu: 0.0.40
codegen_flags: <defaults>
</compile_context>

<pallas_src>
import math

import jax
import jax.numpy as jnp
from jax.experimental import pallas as pl
from jax.experimental.pallas import tpu as pltpu

LANE = 128     # vreg lane width
SUBLANE = 8    # f32 sublane count


def _round_up(x, m):
    return (x + m - 1) // m * m


def target_mlp_kernel(y_ref, w1_ref, b1_ref, w2_ref, b2_ref, out_ref):
    # First linear + SiLU on one (TB, E) batch tile.
    h = jnp.dot(y_ref[...], w1_ref[...], preferred_element_type=jnp.float32)
    h = h + b1_ref[...]                      # (TB, H) + (1, H) broadcast
    h = h * jax.nn.sigmoid(h)                # SiLU; exp/recip use the EUP slot
    # Second linear into a lane-dense (TB, 256) tile.
    o = jnp.dot(h, w2_ref[...], preferred_element_type=jnp.float32)
    o = o + b2_ref[...]                      # (TB, S2p) + (1, S2p) broadcast
    out_ref[...] = o.astype(out_ref.dtype)


class TargetMLPPallas:
    """Deterministically-initialized JAX/Pallas version of TargetMLP / TimeMLP."""

    SIZE_MAP = {4: 2 * 28, 8: 2 * 14, 16: 2 * 14, 32: 2 * 14, 64: 14, 256: 7}

    def __init__(self, embedding_dim, hidden_dim, out_dim, key):
        self.embedding_dim = embedding_dim
        self.hidden_dim = hidden_dim
        self.out_dim = out_dim
        self.size = self.SIZE_MAP[out_dim]
        s2 = self.size * self.size
        self.s2 = s2
        self.s2_pad = _round_up(s2, LANE)    # 196 -> 256 (lane-dense store path)

        k1, k2, k3, k4 = jax.random.split(key, 4)
        # PyTorch nn.Linear default init: U(-1/sqrt(fan_in), 1/sqrt(fan_in)).
        bound1 = 1.0 / math.sqrt(embedding_dim)
        bound2 = 1.0 / math.sqrt(hidden_dim)
        # Weights stored as (in, out) so the kernel does y @ W directly.
        self.w1 = jax.random.uniform(k1, (embedding_dim, hidden_dim),
                                     jnp.float32, -bound1, bound1)
        self.b1 = jax.random.uniform(k2, (1, hidden_dim),
                                     jnp.float32, -bound1, bound1)
        w2 = jax.random.uniform(k3, (hidden_dim, s2),
                                jnp.float32, -bound2, bound2)
        b2 = jax.random.uniform(k4, (1, s2),
                                jnp.float32, -bound2, bound2)
        # Zero-pad the output dimension to a multiple of 128 once, at init.
        pad = self.s2_pad - s2
        self.w2 = jnp.pad(w2, ((0, 0), (0, pad)))
        self.b2 = jnp.pad(b2, ((0, 0), (0, pad)))

    def __call__(self, y, *, block_b=256):
        B, E = y.shape
        H = self.hidden_dim
        S = self.size
        S2p = self.s2_pad

        # Batch tile: multiple of 8 sublanes, capped at block_b rows.
        tb = min(_round_up(B, SUBLANE), block_b)
        b_pad = _round_up(B, tb)
        if b_pad != B:
            y = jnp.pad(y, ((0, b_pad - B), (0, 0)))
        grid = (b_pad // tb,)

        grid_spec = pltpu.PrefetchScalarGridSpec(
            num_scalar_prefetch=0,
            grid=grid,
            in_specs=[
                # Activations: tiled along batch, double-buffered by Pallas.
                pl.BlockSpec((tb, E), lambda i: (i, 0)),
                # Weights / biases: constant block index -> loaded once,
                # stay resident in VMEM across all grid steps.
                pl.BlockSpec((E, H), lambda i: (0, 0)),
                pl.BlockSpec((1, H), lambda i: (0, 0)),
                pl.BlockSpec((H, S2p), lambda i: (0, 0)),
                pl.BlockSpec((1, S2p), lambda i: (0, 0)),
            ],
            out_specs=pl.BlockSpec((tb, S2p), lambda i: (i, 0)),
        )

        out_flat = pl.pallas_call(
            target_mlp_kernel,
            out_shape=jax.ShapeDtypeStruct((b_pad, S2p), jnp.float32),
            grid_spec=grid_spec,
            compiler_params=pltpu.CompilerParams(
                # Independent batch tiles -> shard across both TCs on v7x.
                dimension_semantics=("parallel",)),
        )(y, self.w1, self.b1, self.w2, self.b2)

        # Drop row/col padding, then match .unsqueeze(1).view(-1, 1, S, S).
        out = out_flat[:B, :self.s2]
        return out.reshape(B, 1, S, S)

    def reference(self, y):
        w2 = self.w2[:, :self.s2]
        b2 = self.b2[:, :self.s2]
        h = y @ self.w1 + self.b1
        h = h * jax.nn.sigmoid(h)
        o = h @ w2 + b2
        return o.reshape(y.shape[0], 1, self.size, self.size)


if __name__ == "__main__":
    key = jax.random.PRNGKey(0)
    k_param, k_small, k_big = jax.random.split(key, 3)

    embedding_dim = 32
    hidden_dim = 32
    out_dim = 64          # -> size_map[64] = 14, output (B, 1, 14, 14)

    model = TargetMLPPallas(embedding_dim, hidden_dim, out_dim, k_param)

    # Small batch, as used inside DecoderBlock (B=2).
    y_small = jax.random.normal(k_small, (2, embedding_dim), jnp.float32)
    out_small = jax.block_until_ready(model(y_small))
    ref_small = model.reference(y_small)
    assert out_small.shape == (2, 1, 14, 14), out_small.shape
    assert jnp.allclose(out_small, ref_small, atol=1e-5, rtol=1e-5), \
        "small-batch mismatch vs reference"

    # Larger batch exercises the multi-step, pipelined, parallel grid path.
    y_big = jax.random.normal(k_big, (512, embedding_dim), jnp.float32)
    out_big = jax.block_until_ready(model(y_big))
    ref_big = model.reference(y_big)
    assert out_big.shape == (512, 1, 14, 14), out_big.shape
    assert jnp.allclose(out_big, ref_big, atol=1e-5, rtol=1e-5), \
        "large-batch mismatch vs reference"

    print("KERNEL_OK")
</pallas_src>

<mosaic_0001>
module attributes {stable_mosaic.version = 11 : i64} {
  func.func @target_mlp_kernel(%arg0: i32, %arg1: memref<8x32xf32, #tpu.memory_space<vmem>>, %arg2: memref<32x32xf32, #tpu.memory_space<vmem>>, %arg3: memref<1x32xf32, #tpu.memory_space<vmem>>, %arg4: memref<32x256xf32, #tpu.memory_space<vmem>>, %arg5: memref<1x256xf32, #tpu.memory_space<vmem>>, %arg6: memref<8x256xf32, #tpu.memory_space<vmem>>) attributes {dimension_semantics = [#tpu.dimension_semantics<parallel>], iteration_bounds = array<i64: 1>, scalar_prefetch = 0 : i64, scratch_operands = 0 : i64, tpu.core_type = #tpu.core_type<tc>, window_params = [{transform_indices = @transform_0, window_bounds = array<i64: 8, 32>}, {pipeline_mode = #tpu.pipeline_mode<synchronous>, transform_indices = @transform_1, window_bounds = array<i64: 32, 32>}, {pipeline_mode = #tpu.pipeline_mode<synchronous>, transform_indices = @transform_2, window_bounds = array<i64: 1, 32>}, {pipeline_mode = #tpu.pipeline_mode<synchronous>, transform_indices = @transform_3, window_bounds = array<i64: 32, 256>}, {pipeline_mode = #tpu.pipeline_mode<synchronous>, transform_indices = @transform_4, window_bounds = array<i64: 1, 256>}, {transform_indices = @transform_5, window_bounds = array<i64: 8, 256>}]} {
    %c0 = arith.constant 0 : index
    %c0_0 = arith.constant 0 : index
    %0 = vector.load %arg1[%c0, %c0_0] : memref<8x32xf32, #tpu.memory_space<vmem>>, vector<8x32xf32>
    %c0_1 = arith.constant 0 : index
    %c0_2 = arith.constant 0 : index
    %1 = vector.load %arg2[%c0_1, %c0_2] : memref<32x32xf32, #tpu.memory_space<vmem>>, vector<32x32xf32>
    %cst = arith.constant dense<0.000000e+00> : vector<8x32xf32>
    %2 = tpu.matmul %0, %1, %cst {dimension_numbers = #tpu.dot_dimension_numbers<[1], [0], [0], [1], [0, 0, 1, 1], [], []>} : vector<8x32xf32>, vector<32x32xf32>, vector<8x32xf32> -> vector<8x32xf32>
    %c0_3 = arith.constant 0 : index
    %c0_4 = arith.constant 0 : index
    %3 = vector.load %arg3[%c0_3, %c0_4] : memref<1x32xf32, #tpu.memory_space<vmem>>, vector<1x32xf32>
    %4 = vector.broadcast %3 : vector<1x32xf32> to vector<8x32xf32>
    %5 = arith.addf %2, %4 : vector<8x32xf32>
    %6 = arith.negf %5 : vector<8x32xf32>
    %7 = math.exp %6 : vector<8x32xf32>
    %cst_5 = arith.constant 1.000000e+00 : f32
    %8 = vector.broadcast %cst_5 : f32 to vector<8x32xf32>
    %9 = arith.addf %8, %7 : vector<8x32xf32>
    %10 = arith.divf %8, %9 : vector<8x32xf32>
    %11 = arith.mulf %5, %10 : vector<8x32xf32>
    %c0_6 = arith.constant 0 : index
    %c0_7 = arith.constant 0 : index
    %12 = vector.load %arg4[%c0_6, %c0_7] : memref<32x256xf32, #tpu.memory_space<vmem>>, vector<32x256xf32>
    %cst_8 = arith.constant dense<0.000000e+00> : vector<8x256xf32>
    %13 = tpu.matmul %11, %12, %cst_8 {dimension_numbers = #tpu.dot_dimension_numbers<[1], [0], [0], [1], [0, 0, 1, 1], [], []>} : vector<8x32xf32>, vector<32x256xf32>, vector<8x256xf32> -> vector<8x256xf32>
    %c0_9 = arith.constant 0 : index
    %c0_10 = arith.constant 0 : index
    %14 = vector.load %arg5[%c0_9, %c0_10] : memref<1x256xf32, #tpu.memory_space<vmem>>, vector<1x256xf32>
    %15 = vector.broadcast %14 : vector<1x256xf32> to vector<8x256xf32>
    %16 = arith.addf %13, %15 : vector<8x256xf32>
    %c0_11 = arith.constant 0 : index
    %c0_12 = arith.constant 0 : index
    %17 = vector.load %arg6[%c0_11, %c0_12] : memref<8x256xf32, #tpu.memory_space<vmem>>, vector<8x256xf32>
    tpu.vector_store %arg6[%c0_11, %c0_12], %16 {strides = array<i32>} : memref<8x256xf32, #tpu.memory_space<vmem>>, vector<8x256xf32>,
    return
  }
  func.func @transform_0(%arg0: i32) -> (i32, i32) {
    %c0_i32 = arith.constant 0 : i32
    %c0_i32_0 = arith.constant 0 : i32
    return %arg0, %c0_i32 : i32, i32
  }
  func.func @transform_1(%arg0: i32) -> (i32, i32) {
    %c0_i32 = arith.constant 0 : i32
    %c0_i32_0 = arith.constant 0 : i32
    %c0_i32_1 = arith.constant 0 : i32
    return %c0_i32, %c0_i32_0 : i32, i32
  }
  func.func @transform_2(%arg0: i32) -> (i32, i32) {
    %c0_i32 = arith.constant 0 : i32
    %c0_i32_0 = arith.constant 0 : i32
    %c0_i32_1 = arith.constant 0 : i32
    return %c0_i32, %c0_i32_0 : i32, i32
  }
  func.func @transform_3(%arg0: i32) -> (i32, i32) {
    %c0_i32 = arith.constant 0 : i32
    %c0_i32_0 = arith.constant 0 : i32
    %c0_i32_1 = arith.constant 0 : i32
    return %c0_i32, %c0_i32_0 : i32, i32
  }
  func.func @transform_4(%arg0: i32) -> (i32, i32) {
    %c0_i32 = arith.constant 0 : i32
    %c0_i32_0 = arith.constant 0 : i32
    %c0_i32_1 = arith.constant 0 : i32
    return %c0_i32, %c0_i32_0 : i32, i32
  }
  func.func @transform_5(%arg0: i32) -> (i32, i32) {
    %c0_i32 = arith.constant 0 : i32
    %c0_i32_0 = arith.constant 0 : i32
    return %arg0, %c0_i32 : i32, i32
  }
}

</mosaic_0001>

<llo_original>
// kernel: tpu_custom_call.1
$region0: #{tpu_custom_call.1}
  #allocation0 [shape = 'u32[]', space=smem, size = 0x4, offset = 0x4, fixed_abs, tag = 'smem constant byte address 0x4 - core index']
  #allocation1 [shape = 'u32[72,128]{1,0:T(1,128)}', space=vmem, size = 0x9000, scoped, tag = 'internal scratch']
  %s0 = inlined_call_operand.hbm [shape: f32[8,32], index: 0, kind: input, shape index: {}]
  %s1 = inlined_call_operand.hbm [shape: f32[32,32], index: 1, kind: input, shape index: {}]
  %s2 = inlined_call_operand.vmem [shape: f32[1,32], index: 2, kind: input, shape index: {}]
  %s3 = inlined_call_operand.hbm [shape: f32[32,256], index: 3, kind: input, shape index: {}]
  %s4 = inlined_call_operand.vmem [shape: f32[1,256], index: 4, kind: input, shape index: {}]
  %s5 = inlined_call_operand.hbm [shape: f32[8,256], index: 5, kind: output, shape index: {}]
  %s6 = sld [smem:[#allocation0]]
  $region42: #{tpu_custom_call.1} parent=0
    _
  %s8 = ssub.s32 1, %s6
  %s9 = scalar_select 0, %s8, %s6
  $region1: #{tpu_custom_call.1} parent=0
    #allocation2 [shape = 'u8[4096]{0}', space=vmem, size = 0x1000, scoped, tag = 'input window, operand 0, single buffered']
    #allocation3 [shape = 's32[1]{0}', space=sflag, size = 0x4, scoped, tag = 'scoped memory for tpu_custom_call.1']
    #allocation4 [shape = 's32[1]{0}', space=sflag, size = 0x4, scoped, tag = 'scoped memory for tpu_custom_call.1']
    #allocation5 [shape = 'u8[16384]{0}', space=vmem, size = 0x4000, scoped, tag = 'input window, operand 1, single buffered']
    #allocation6 [shape = 's32[1]{0}', space=sflag, size = 0x4, scoped, tag = 'scoped memory for tpu_custom_call.1']
    #allocation7 [shape = 'u8[32768]{0}', space=vmem, size = 0x8000, scoped, tag = 'input window, operand 3, single buffered']
    #allocation8 [shape = 'u8[8192]{0}', space=vmem, size = 0x2000, scoped, tag = 'output window, operand 0, single buffered']
    %10 = vsyncpa [#allocation3], 0
    %11 = vsyncpa [#allocation6], 0
    %12 = vsyncpa [#allocation4], 0
    // Predicated region
    $region2: #{tpu_custom_call.1} parent=1 // pred_check
      _
    $region3: #{tpu_custom_call.1} parent=1 // pred_check_branch
      %14 = sbr.rel (0) target = $region5
    $region4: #{tpu_custom_call.1} parent=1 // pred_region
      %16 = vsyncadd [#allocation3], 0
      %s18 = sshll.u32 %s0, 4
      %s19 = int_to_ptr.hbm [resolvable:$true] %s18
      %s20 = sshll.u32 [#allocation2], 4
      %s21 = int_to_ptr.vmem [resolvable:$true] %s20
      %23 = dma.hbm_to_vmem [thread:$0]  %s19, 128, %s21, [#allocation3]
    $region5: #{tpu_custom_call.1} parent=1 // pred_fallthru
      _
    // Predicated region
    $region6: #{tpu_custom_call.1} parent=1 // pred_check
      _
    $region7: #{tpu_custom_call.1} parent=1 // pred_check_branch
      %25 = sbr.rel (0) target = $region9
    $region8: #{tpu_custom_call.1} parent=1 // pred_region
      %27 = vsyncadd [#allocation6], 0
      %s28 = sshll.u32 %s1, 4
      %s29 = int_to_ptr.hbm [resolvable:$true] %s28
      %s30 = sshll.u32 [#allocation5], 4
      %s31 = int_to_ptr.vmem [resolvable:$true] %s30
      %36 = dma.hbm_to_vmem [thread:$0]  %s29, 512, %s31, [#allocation6], 128, 128, 8
    $region9: #{tpu_custom_call.1} parent=1 // pred_fallthru
      _
    // Predicated region
    $region10: #{tpu_custom_call.1} parent=1 // pred_check
      _
    $region11: #{tpu_custom_call.1} parent=1 // pred_check_branch
      %38 = sbr.rel (0) target = $region13
    $region12: #{tpu_custom_call.1} parent=1 // pred_region
      _
    $region13: #{tpu_custom_call.1} parent=1 // pred_fallthru
      _
    // Predicated region
    $region14: #{tpu_custom_call.1} parent=1 // pred_check
      _
    $region15: #{tpu_custom_call.1} parent=1 // pred_check_branch
      %40 = sbr.rel (0) target = $region17
    $region16: #{tpu_custom_call.1} parent=1 // pred_region
      %42 = vsyncadd [#allocation6], 0
      %s43 = sshll.u32 %s3, 4
      %s44 = int_to_ptr.hbm [resolvable:$true] %s43
      %s45 = sshll.u32 [#allocation7], 4
      %s46 = int_to_ptr.vmem [resolvable:$true] %s45
      %51 = dma.hbm_to_vmem [thread:$0]  %s44, 1024, %s46, [#allocation6], 256, 256, 16
    $region17: #{tpu_custom_call.1} parent=1 // pred_fallthru
      _
    // Predicated region
    $region18: #{tpu_custom_call.1} parent=1 // pred_check
      _
    $region19: #{tpu_custom_call.1} parent=1 // pred_check_branch
      %53 = sbr.rel (0) target = $region21
    $region20: #{tpu_custom_call.1} parent=1 // pred_region
      _
    $region21: #{tpu_custom_call.1} parent=1 // pred_fallthru
      _
    // Predicated region
    $region22: #{tpu_custom_call.1} parent=1 // pred_check
      _
    $region23: #{tpu_custom_call.1} parent=1 // pred_check_branch
      %55 = sbr.rel (0) target = $region25
    $region24: #{tpu_custom_call.1} parent=1 // pred_region
      %57 = dma.done [#allocation3], 128
    $region25: #{tpu_custom_call.1} parent=1 // pred_fallthru
      _
    // Predicated region
    $region26: #{tpu_custom_call.1} parent=1 // pred_check
      _
    $region27: #{tpu_custom_call.1} parent=1 // pred_check_branch
      %59 = sbr.rel (0) target = $region29
    $region28: #{tpu_custom_call.1} parent=1 // pred_region
      %61 = dma.done [#allocation6], 512
    $region29: #{tpu_custom_call.1} parent=1 // pred_fallthru
      _
    // Predicated region
    $region30: #{tpu_custom_call.1} parent=1 // pred_check
      _
    $region31: #{tpu_custom_call.1} parent=1 // pred_check_branch
      %63 = sbr.rel (0) target = $region33
    $region32: #{tpu_custom_call.1} parent=1 // pred_region
      %65 = dma.done [#allocation6], 1024
    $region33: #{tpu_custom_call.1} parent=1 // pred_fallthru
      _
    %v66 = vld [vmem:[#allocation2] sm:$0xff]
    %v67 = vld [vmem:[#allocation5] sm:$0xff]
    %v68 = vld [vmem:[#allocation5 + $0x8] sm:$0xff]
    %v69 = vld [vmem:[#allocation5 + $0x10] sm:$0xff]
    %v70 = vld [vmem:[#allocation5 + $0x18] sm:$0xff]
    %v71 = vld [vmem:[%s2] sm:$0x1]
    %v73 = vperm.slane %v71, 0
    %vm75 = vcmask 261120
    %v77 = vsel %vm75, %v66, 0
    %79 = vmatpush.msra.mxu0 0.0
    %80 = vmatpush.msra.mxu0 0.0
    %81 = vmatpush.msra.mxu0 0.0
    %82 = vmatpush.msra.mxu0 0.0
    %83 = vmatpush.msra.mxu0 0.0
    %84 = vmatpush.msra.mxu0 0.0
    %85 = vmatpush.msra.mxu0 0.0
    %86 = vmatpush.msra.mxu0 0.0
    %87 = vmatpush.msra.mxu0 0.0
    %88 = vmatpush.msra.mxu0 0.0
    %89 = vmatpush.msra.mxu0 0.0
    %90 = vmatpush.msra.mxu0 0.0
    %91 = vmatpush.msra.mxu0 %v70
    %92 = vmatpush.msra.mxu0 %v69
    %93 = vmatpush.msra.mxu0 %v68
    %94 = vmatpush.msra.mxu0 %v67
    %95 = vmatmul.f32.gmra.mxu0 %v77
    %v96 = vpop.f32.mrf.mxu0
    %v97 = vadd.f32 %v73, %v96
    %98 = vdwg.mxu0
    %v99 = vxor.u32 %v97, 2147483648
    %v100 = vmul.f32 %v99, 1.442695
    %v101 = vpow.pop %v100
    %v102 = vadd.f32 %v101, 1.0
    %v103 = vrcp.pop %v102
    %v104 = vmul.f32 %v102, %v103
    %v105 = vsub.f32 1.0, %v104
    %v106 = vmul.f32 %v103, %v105
    %v107 = vadd.f32 %v103, %v106
    %vm108 = vweird.f32 %v102
    %vm109 = vweird.f32 %v103
    %vm110 = vmor %vm108, %vm109
    %v111 = vsel %vm110, %v103, %v107
    %v112 = vand.u32 2147483647, %v102
    %vm113 = vcmp.eq.f32.partialorder %v112, 8.507059e+37
    %v114 = vand.u32 %v102, 2147483648
    %v115 = vor.u32 1.1754944e-38, %v114
    %v116 = vsel %vm113, %v115, %v111
    %v117 = vmul.f32 1.0, %v116
    %v118 = vmul.f32 %v97, %v117
    %v119 = vld [vmem:[#allocation7] sm:$0xff]
    %v120 = vld [vmem:[#allocation7 + $0x8] sm:$0xff]
    %v121 = vld [vmem:[#allocation7 + $0x10] sm:$0xff]
    %v122 = vld [vmem:[#allocation7 + $0x18] sm:$0xff]
    %v123 = vld [vmem:[#allocation7 + $0x20] sm:$0xff]
    %v124 = vld [vmem:[#allocation7 + $0x28] sm:$0xff]
    %v125 = vld [vmem:[#allocation7 + $0x30] sm:$0xff]
    %v126 = vld [vmem:[#allocation7 + $0x38] sm:$0xff]
    %v127 = vld [vmem:[%s4] sm:$0x3]
    %v129 = vperm.slane %v127, 0
    %v130 = vperm.slane %v127, 1
    %v134 = vsel %vm75, %v118, 0
    %136 = vmatpush.msra.mxu0 0.0
    %137 = vmatpush.msra.mxu0 0.0
    %138 = vmatpush.msra.mxu0 0.0
    %139 = vmatpush.msra.mxu0 0.0
    %140 = vmatpush.msra.mxu0 0.0
    %141 = vmatpush.msra.mxu0 0.0
    %142 = vmatpush.msra.mxu0 0.0
    %143 = vmatpush.msra.mxu0 0.0
    %144 = vmatpush.msra.mxu0 0.0
    %145 = vmatpush.msra.mxu0 0.0
    %146 = vmatpush.msra.mxu0 0.0
    %147 = vmatpush.msra.mxu0 0.0
    %148 = vmatpush.msra.mxu0 %v125
    %149 = vmatpush.msra.mxu0 %v123
    %150 = vmatpush.msra.mxu0 %v121
    %151 = vmatpush.msra.mxu0 %v119
    %152 = vmatmul.f32.gmra.mxu0 %v134
    %v153 = vpop.f32.mrf.mxu0
    %v154 = vadd.f32 %v129, %v153
    %155 = vdwg.mxu0
    %156 = vmatpush.msra.mxu0 0.0
    %157 = vmatpush.msra.mxu0 0.0
    %158 = vmatpush.msra.mxu0 0.0
    %159 = vmatpush.msra.mxu0 0.0
    %160 = vmatpush.msra.mxu0 0.0
    %161 = vmatpush.msra.mxu0 0.0
    %162 = vmatpush.msra.mxu0 0.0
    %163 = vmatpush.msra.mxu0 0.0
    %164 = vmatpush.msra.mxu0 0.0
    %165 = vmatpush.msra.mxu0 0.0
    %166 = vmatpush.msra.mxu0 0.0
    %167 = vmatpush.msra.mxu0 0.0
    %168 = vmatpush.msra.mxu0 %v126
    %169 = vmatpush.msra.mxu0 %v124
    %170 = vmatpush.msra.mxu0 %v122
    %171 = vmatpush.msra.mxu0 %v120
    %172 = vmatmul.f32.gmra.mxu0 %v134
    %v173 = vpop.f32.mrf.mxu0
    %v174 = vadd.f32 %v130, %v173
    %175 = vdwg.mxu0
    %176 = vst [vmem:[#allocation8] sm:$0xff] %v154
    %177 = vst [vmem:[#allocation8 + $0x8] sm:$0xff] %v174
    // Predicated region
    $region34: #{tpu_custom_call.1} parent=1 // pred_check
      _
    $region35: #{tpu_custom_call.1} parent=1 // pred_check_branch
      %179 = sbr.rel (0) target = $region37
    $region36: #{tpu_custom_call.1} parent=1 // pred_region
      %181 = vsyncadd [#allocation4], 0
      %s183 = sshll.u32 [#allocation8], 4
      %s184 = int_to_ptr.vmem [resolvable:$true] %s183
      %s185 = sshll.u32 %s5, 4
      %s186 = int_to_ptr.hbm [resolvable:$true] %s185
      %188 = dma.vmem_to_hbm [thread:$0]  %s184, 256, %s186, [#allocation4]
    $region37: #{tpu_custom_call.1} parent=1 // pred_fallthru
      _
    // Predicated region
    $region38: #{tpu_custom_call.1} parent=1 // pred_check
      _
    $region39: #{tpu_custom_call.1} parent=1 // pred_check_branch
      %190 = sbr.rel (0) target = $region41
    $region40: #{tpu_custom_call.1} parent=1 // pred_region
      %192 = dma.done [#allocation4], 256
    $region41: #{tpu_custom_call.1} parent=1 // pred_fallthru
      _
    %193 = vsyncpa [#allocation3], 1
    %194 = vsyncpa [#allocation6], 1
    %195 = vsyncpa [#allocation4], 1

</llo_original>
